<compile_context>
chip_gen: v7x
topology: tpu7x:2x2x1
jax: 0.10.0
libtpu: 0.0.40
codegen_flags: <defaults>
</compile_context>

<pallas_src>
import math

import jax
import jax.numpy as jnp
from jax.experimental import pallas as pl
from jax.experimental.pallas import tpu as pltpu


def _qkv_matmul_kernel(x_ref, w_ref, b_ref, o_ref):
    # x_ref: (C, TM)   w_ref: (3C, C)   b_ref: (3C, 1) f32   o_ref: (3C, TM)
    acc = jnp.dot(w_ref[...], x_ref[...], preferred_element_type=jnp.float32)
    o_ref[...] = (acc + b_ref[...]).astype(o_ref.dtype)


def _choose_tile(m, cap):
    """Largest lane-aligned (multiple of 128) spatial tile <= cap.
    Prefers a tile that divides m exactly so no pad copy is needed."""
    cap = max(128, (min(cap, max(m, 128)) // 128) * 128)
    if m % 128 == 0:
        t = min(cap, m)
        while t >= 128:
            if m % t == 0:
                return t, m                       # exact fit, no padding
            t -= 128
    m_pad = ((m + cap - 1) // cap) * cap
    return cap, m_pad


def _resident_spec_single(shape):
    # Operand identical for every grid step -> single-buffer it (constant
    # index_map means double-buffering is pure wasted VMEM).
    return pl.BlockSpec(shape, lambda b, j: (0,) * len(shape),
                        pipeline_mode=pl.Buffered(1))


def _resident_spec_default(shape):
    return pl.BlockSpec(shape, lambda b, j: (0,) * len(shape))


def qkv_projection_forward(x, weight, bias, num_head, *, tile_m=512,
                           use_bf16=False,
                           vmem_budget_bytes=48 * 1024 * 1024):
    """x: (B, C, H, W); weight: (3C, C) (1x1 conv kernel); bias: (3C,).

    Returns (B, num_head, 3C // num_head, H, W), matching
    rearrange(conv1x1(x), 'b (l c) h w -> b l c h w', l=num_head).
    """
    B, C, H, W = x.shape
    N = weight.shape[0]                                   # 3 * C
    assert weight.shape[1] == C
    assert N % num_head == 0

    out_dtype = x.dtype
    op_dtype = jnp.bfloat16 if use_bf16 else x.dtype
    x3 = x.reshape(B, C, H * W).astype(op_dtype)          # free reshape (channel-major)
    w = weight.astype(op_dtype)                           # (3C, C)
    b = bias.reshape(N, 1).astype(jnp.float32)            # f32 bias / f32 accumulate

    M = H * W

    # Pick the spatial tile so resident weight (1x) + bias + double-buffered
    # x/out tiles fit the VMEM budget.
    cap = tile_m
    while True:
        tm, m_pad = _choose_tile(M, cap)
        need = (N * C * jnp.dtype(op_dtype).itemsize            # weight, Buffered(1)
                + N * 128 * 4                                   # bias (lane-padded)
                + 2 * C * tm * jnp.dtype(op_dtype).itemsize     # x tiles (double-buf)
                + 2 * N * tm * jnp.dtype(out_dtype).itemsize)   # out tiles (double-buf)
        if need <= vmem_budget_bytes or tm <= 128:
            break
        cap = tm // 2
    # TODO(synk): for very large C (resident weight alone > ~48 MiB on v7x) add a
    # K grid axis with an f32 acc scratch instead of keeping the full weight resident.

    if m_pad != M:
        # TODO(synk): handle the ragged spatial tail with a masked store instead of
        # materializing a padded copy of x in HBM.
        x3 = jnp.pad(x3, ((0, 0), (0, 0), (0, m_pad - M)))

    grid = (B, m_pad // tm)
    x_spec = pl.BlockSpec((None, C, tm), lambda bb, j: (bb, 0, j))
    out_spec = pl.BlockSpec((None, N, tm), lambda bb, j: (bb, 0, j))
    cost = pl.CostEstimate(
        flops=2 * B * m_pad * C * N,
        transcendentals=0,
        bytes_accessed=(B * m_pad * C * jnp.dtype(op_dtype).itemsize
                        + N * C * jnp.dtype(op_dtype).itemsize + N * 4
                        + B * m_pad * N * jnp.dtype(out_dtype).itemsize),
    )
    compiler_params = pltpu.CompilerParams(
        dimension_semantics=("parallel", "parallel"),      # independent tiles
        vmem_limit_bytes=int(min(64 * 1024 * 1024,
                                 max(32 * 1024 * 1024, need * 3 // 2))),
    )

    def run(resident_spec_fn):
        return pl.pallas_call(
            _qkv_matmul_kernel,
            out_shape=jax.ShapeDtypeStruct((B, N, m_pad), out_dtype),
            grid=grid,
            in_specs=[x_spec,
                      resident_spec_fn((N, C)),            # full weight, resident
                      resident_spec_fn((N, 1))],           # full bias, resident
            out_specs=out_spec,
            compiler_params=compiler_params,
            cost_estimate=cost,
        )(x3, w, b)

    try:
        y = run(_resident_spec_single)
    except Exception:
        # pipeline_mode=pl.Buffered(1) unsupported on this jax version; fall back
        # to default double-buffered resident operands (costs VMEM, not correctness).
        y = run(_resident_spec_default)

    if m_pad != M:
        y = y[:, :, :M]
    y = y.reshape(B, N, H, W)                                    # already channel-major
    return y.reshape(B, num_head, N // num_head, H, W)           # 'b (l c) h w -> b l c h w'


class QKVProjection:
    """Mirrors the PyTorch QKVProjection module (1x1 conv to 3*dim + head split)."""

    def __init__(self, dim, num_head, qkv_bias=True, *, key=None, dtype=jnp.float32):
        self.dim = dim
        self.num_head = num_head
        if key is None:
            key = jax.random.PRNGKey(0)
        kw, kb = jax.random.split(key)
        bound = 1.0 / math.sqrt(dim)                    # conv2d default init range
        self.weight = jax.random.uniform(
            kw, (3 * dim, dim), dtype, minval=-bound, maxval=bound)
        if qkv_bias:
            self.bias = jax.random.uniform(
                kb, (3 * dim,), dtype, minval=-bound, maxval=bound)
        else:
            self.bias = jnp.zeros((3 * dim,), dtype)

    def __call__(self, x):
        return qkv_projection_forward(x, self.weight, self.bias, self.num_head)


if __name__ == "__main__":
    key = jax.random.PRNGKey(0)
    kx, kp = jax.random.split(key)

    B, dim, H, W = 2, 32, 16, 16
    num_head = 4
    x = jax.random.normal(kx, (B, dim, H, W), dtype=jnp.float32)

    mod = QKVProjection(dim, num_head, qkv_bias=True, key=kp)
    out = jax.block_until_ready(mod(x))

    assert out.shape == (B, num_head, 3 * dim // num_head, H, W)
    assert out.dtype == x.dtype

    # Pure-JAX reference: 1x1 conv == per-pixel matmul, then head split.
    xl = jnp.transpose(x, (0, 2, 3, 1))                               # (B,H,W,C)
    ref = jnp.einsum("bhwc,oc->bhwo", xl, mod.weight) + mod.bias      # (B,H,W,3C)
    ref = jnp.transpose(ref, (0, 3, 1, 2)).reshape(out.shape)
    assert jnp.allclose(out, ref, atol=1e-4, rtol=1e-4)

    print("KERNEL_OK")
</pallas_src>

<mosaic_0001>
module attributes {stable_mosaic.version = 11 : i64} {
  func.func @_qkv_matmul_kernel(%arg0: i32, %arg1: i32, %arg2: memref<1x32x256xf32, #tpu.memory_space<vmem>>, %arg3: memref<96x32xf32, #tpu.memory_space<vmem>>, %arg4: memref<96x1xf32, #tpu.memory_space<vmem>>, %arg5: memref<1x96x256xf32, #tpu.memory_space<vmem>>) attributes {dimension_semantics = [#tpu.dimension_semantics<parallel>, #tpu.dimension_semantics<parallel>], iteration_bounds = array<i64: 2, 1>, scalar_prefetch = 0 : i64, scratch_operands = 0 : i64, tpu.core_type = #tpu.core_type<tc>, window_params = [{transform_indices = @transform_0, window_bounds = array<i64: 1, 32, 256>}, {pipeline_mode = #tpu.pipeline_mode<synchronous>, transform_indices = @transform_1, window_bounds = array<i64: 96, 32>}, {pipeline_mode = #tpu.pipeline_mode<synchronous>, transform_indices = @transform_2, window_bounds = array<i64: 96, 1>}, {transform_indices = @transform_3, window_bounds = array<i64: 1, 96, 256>}]} {
    %c0 = arith.constant 0 : index
    %c0_0 = arith.constant 0 : index
    %0 = vector.load %arg3[%c0, %c0_0] : memref<96x32xf32, #tpu.memory_space<vmem>>, vector<96x32xf32>
    %c0_1 = arith.constant 0 : index
    %c0_2 = arith.constant 0 : index
    %c0_3 = arith.constant 0 : index
    %1 = vector.load %arg2[%c0_1, %c0_2, %c0_3] : memref<1x32x256xf32, #tpu.memory_space<vmem>>, vector<1x32x256xf32>
    %2 = vector.shape_cast %1 : vector<1x32x256xf32> to vector<32x256xf32>
    %cst = arith.constant dense<0.000000e+00> : vector<96x256xf32>
    %3 = tpu.matmul %0, %2, %cst {dimension_numbers = #tpu.dot_dimension_numbers<[1], [0], [0], [1], [0, 0, 1, 1], [], []>} : vector<96x32xf32>, vector<32x256xf32>, vector<96x256xf32> -> vector<96x256xf32>
    %c0_4 = arith.constant 0 : index
    %c0_5 = arith.constant 0 : index
    %4 = vector.load %arg4[%c0_4, %c0_5] : memref<96x1xf32, #tpu.memory_space<vmem>>, vector<96x1xf32>
    %5 = vector.broadcast %4 : vector<96x1xf32> to vector<96x256xf32>
    %6 = arith.addf %3, %5 : vector<96x256xf32>
    %c0_6 = arith.constant 0 : index
    %c0_7 = arith.constant 0 : index
    %c0_8 = arith.constant 0 : index
    %7 = vector.load %arg5[%c0_6, %c0_7, %c0_8] : memref<1x96x256xf32, #tpu.memory_space<vmem>>, vector<1x96x256xf32>
    %8 = vector.shape_cast %7 : vector<1x96x256xf32> to vector<96x256xf32>
    %9 = vector.shape_cast %6 : vector<96x256xf32> to vector<1x96x256xf32>
    tpu.vector_store %arg5[%c0_6, %c0_7, %c0_8], %9 {strides = array<i32>} : memref<1x96x256xf32, #tpu.memory_space<vmem>>, vector<1x96x256xf32>,
    return
  }
  func.func @transform_0(%arg0: i32, %arg1: i32) -> (i32, i32, i32) {
    %c0_i32 = arith.constant 0 : i32
    %c0_i32_0 = arith.constant 0 : i32
    return %arg0, %c0_i32, %arg1 : i32, i32, i32
  }
  func.func @transform_1(%arg0: i32, %arg1: i32) -> (i32, i32) {
    %c0_i32 = arith.constant 0 : i32
    %c0_i32_0 = arith.constant 0 : i32
    %c0_i32_1 = arith.constant 0 : i32
    return %c0_i32, %c0_i32_0 : i32, i32
  }
  func.func @transform_2(%arg0: i32, %arg1: i32) -> (i32, i32) {
    %c0_i32 = arith.constant 0 : i32
    %c0_i32_0 = arith.constant 0 : i32
    %c0_i32_1 = arith.constant 0 : i32
    return %c0_i32, %c0_i32_0 : i32, i32
  }
  func.func @transform_3(%arg0: i32, %arg1: i32) -> (i32, i32, i32) {
    %c0_i32 = arith.constant 0 : i32
    %c0_i32_0 = arith.constant 0 : i32
    return %arg0, %c0_i32, %arg1 : i32, i32, i32
  }
}

module attributes {stable_mosaic.version = 11 : i64} {
  func.func @_qkv_matmul_kernel(%arg0: i32, %arg1: i32, %arg2: memref<1x32x256xf32, #tpu.memory_space<vmem>>, %arg3: memref<96x32xf32, #tpu.memory_space<vmem>>, %arg4: memref<96x1xf32, #tpu.memory_space<vmem>>, %arg5: memref<1x96x256xf32, #tpu.memory_space<vmem>>) attributes {dimension_semantics = [#tpu.dimension_semantics<parallel>, #tpu.dimension_semantics<parallel>], iteration_bounds = array<i64: 2, 1>, scalar_prefetch = 0 : i64, scratch_operands = 0 : i64, tpu.core_type = #tpu.core_type<tc>, window_params = [{transform_indices = @transform_0, window_bounds = array<i64: 1, 32, 256>}, {pipeline_mode = #tpu.pipeline_mode<synchronous>, transform_indices = @transform_1, window_bounds = array<i64: 96, 32>}, {pipeline_mode = #tpu.pipeline_mode<synchronous>, transform_indices = @transform_2, window_bounds = array<i64: 96, 1>}, {transform_indices = @transform_3, window_bounds = array<i64: 1, 96, 256>}]} {
    %c0 = arith.constant 0 : index
    %c0_0 = arith.constant 0 : index
    %0 = vector.load %arg3[%c0, %c0_0] : memref<96x32xf32, #tpu.memory_space<vmem>>, vector<96x32xf32>
    %c0_1 = arith.constant 0 : index
    %c0_2 = arith.constant 0 : index
    %c0_3 = arith.constant 0 : index
    %1 = vector.load %arg2[%c0_1, %c0_2, %c0_3] : memref<1x32x256xf32, #tpu.memory_space<vmem>>, vector<1x32x256xf32>
    %2 = vector.shape_cast %1 : vector<1x32x256xf32> to vector<32x256xf32>
    %cst = arith.constant dense<0.000000e+00> : vector<96x256xf32>
    %3 = tpu.matmul %0, %2, %cst {dimension_numbers = #tpu.dot_dimension_numbers<[1], [0], [0], [1], [0, 0, 1, 1], [], []>} : vector<96x32xf32>, vector<32x256xf32>, vector<96x256xf32> -> vector<96x256xf32>
    %c0_4 = arith.constant 0 : index
    %c0_5 = arith.constant 0 : index
    %4 = vector.load %arg4[%c0_4, %c0_5] : memref<96x1xf32, #tpu.memory_space<vmem>>, vector<96x1xf32>
    %5 = vector.broadcast %4 : vector<96x1xf32> to vector<96x256xf32>
    %6 = arith.addf %3, %5 : vector<96x256xf32>
    %c0_6 = arith.constant 0 : index
    %c0_7 = arith.constant 0 : index
    %c0_8 = arith.constant 0 : index
    %7 = vector.load %arg5[%c0_6, %c0_7, %c0_8] : memref<1x96x256xf32, #tpu.memory_space<vmem>>, vector<1x96x256xf32>
    %8 = vector.shape_cast %7 : vector<1x96x256xf32> to vector<96x256xf32>
    %9 = vector.shape_cast %6 : vector<96x256xf32> to vector<1x96x256xf32>
    tpu.vector_store %arg5[%c0_6, %c0_7, %c0_8], %9 {strides = array<i32>} : memref<1x96x256xf32, #tpu.memory_space<vmem>>, vector<1x96x256xf32>,
    return
  }
  func.func @transform_0(%arg0: i32, %arg1: i32) -> (i32, i32, i32) {
    %c0_i32 = arith.constant 0 : i32
    %c0_i32_0 = arith.constant 0 : i32
    return %arg0, %c0_i32, %arg1 : i32, i32, i32
  }
  func.func @transform_1(%arg0: i32, %arg1: i32) -> (i32, i32) {
    %c0_i32 = arith.constant 0 : i32
    %c0_i32_0 = arith.constant 0 : i32
    %c0_i32_1 = arith.constant 0 : i32
    return %c0_i32, %c0_i32_0 : i32, i32
  }
  func.func @transform_2(%arg0: i32, %arg1: i32) -> (i32, i32) {
    %c0_i32 = arith.constant 0 : i32
    %c0_i32_0 = arith.constant 0 : i32
    %c0_i32_1 = arith.constant 0 : i32
    return %c0_i32, %c0_i32_0 : i32, i32
  }
  func.func @transform_3(%arg0: i32, %arg1: i32) -> (i32, i32, i32) {
    %c0_i32 = arith.constant 0 : i32
    %c0_i32_0 = arith.constant 0 : i32
    return %arg0, %c0_i32, %arg1 : i32, i32, i32
  }
}

</mosaic_0001>

<llo_original>
// kernel: tpu_custom_call.1
$region0: #{tpu_custom_call.1}
  #allocation0 [shape = 'u32[]', space=smem, size = 0x4, offset = 0x4, fixed_abs, tag = 'smem constant byte address 0x4 - core index']
  #allocation1 [shape = 'u32[144,128]{1,0:T(1,128)}', space=vmem, size = 0x12000, scoped, tag = 'internal scratch']
  %s0 = inlined_call_operand.vmem [shape: f32[2,32,256], index: 0, kind: input, shape index: {}]
  %s1 = inlined_call_operand.vmem [shape: f32[96,32], index: 1, kind: input, shape index: {}]
  %s2 = inlined_call_operand.vmem [shape: f32[96,1], index: 2, kind: input, shape index: {}]
  %s3 = inlined_call_operand.hbm [shape: f32[2,96,256], index: 3, kind: output, shape index: {}]
  %s4 = sld [smem:[#allocation0]]
  $region45: #{tpu_custom_call.1} parent=0
    _
  %s6 = ssub.s32 1, %s4
  %s7 = scalar_select 0, %s6, %s4
  $region1: #{tpu_custom_call.1} parent=0
    #allocation2 [shape = 'u8[196608]{0}', space=vmem, size = 0x30000, scoped, tag = 'output window, operand 0']
    #allocation3 [shape = 's32[2]{0}', space=sflag, size = 0x8, scoped, tag = 'scoped memory for tpu_custom_call.1']
    %8 = vsyncpa [#allocation3], 0
    %s9 = scalar_lea.sflag [#allocation3], 1
    %10 = vsyncpa %s9, 0
    loop: start=0, step=1, limit=4
    $region2: #{tpu_custom_call.1} parent=1 // loop_pre_header
      _
    $region3: #{tpu_custom_call.1} parent=1 // loop_header
      %s12 = sphi 0, %s16
      %p13 = scmp.ge.s32.totalorder %s12, 4
      %s19 = sphi 0, %s31
      %s20 = sphi 0, %s27
      %s21 = sphi 0, %s19
      %s22 = sphi 0, %s20
      %s23 = sphi 0, %s21
      %s24 = sphi 0, %s22
      %s36 = sphi 0, %s38
      %s39 = sphi 0, %s36
      %s40 = sphi 0, %s39
      %s56 = sphi 0, %s40
      %s60 = sphi 0, %s60
      %s62 = sphi 0, %s60
      %s63 = sphi 0, %s62
      %s77 = sphi 0, %s63
      %s81 = sphi 0, %s81
      %s83 = sphi 0, %s81
      %s84 = sphi 0, %s83
      %s98 = sphi 0, %s84
      %s106 = sphi 0, %s108
      %s109 = sphi 0, %s106
      %s110 = sphi 0, %s109
      %s126 = sphi 0, %s110
    $region4: #{tpu_custom_call.1} parent=1 // loop_header_branch
      %15 = sbr.rel (%p13) target = $region8
    $region5: #{tpu_custom_call.1} parent=1 // loop_body
      %s17 = ssub.s32 %s12, 1
      %s18 = ssub.s32 %s12, 2
      %s25 = sadd.s32 1, %s20
      %p26 = scmp.ge.s32.totalorder %s25, 1
      %s27 = scalar_select %p26, 0, %s25
      %s28 = sadd.s32 1, %s19
      %s29 = scalar_select %p26, %s28, %s19
      %p30 = scmp.ge.s32.totalorder %s29, 2
      %s31 = scalar_select %p30, 0, %s29
      %s32 = ssub.s32 %s19, %s31
      %s33 = ssub.s32 %s20, %s27
      %s34 = sor.u32 %s32, %s33
      %p35 = scmp.eq.s32.totalorder %s34, 0
      %s37 = sadd.s32 %s36, 1
      %s38 = scalar_select %p35, %s36, %s37
      %p41 = pneg %p35
      %p42 = scmp.eq.s32.totalorder %s12, 1
      %p43 = por %p41, %p42
      %p44 = scmp.ne.s32.totalorder %s36, %s39
      %p45 = scmp.eq.s32.totalorder %s12, 0
      %p46 = por %p44, %p45
      %p47 = scmp.ne.s32.totalorder %s36, %s39
      %p48 = scmp.eq.s32.totalorder %s17, 1
      %p49 = por %p47, %p48
      %p50 = scmp.ne.s32.totalorder %s39, %s40
      %p51 = scmp.eq.s32.totalorder %s17, 0
      %p52 = por %p50, %p51
      %p53 = scmp.ne.s32.totalorder %s39, %s40
      %p54 = scmp.eq.s32.totalorder %s18, 1
      %p55 = por %p53, %p54
      %p57 = scmp.ne.s32.totalorder %s40, %s56
      %p58 = scmp.eq.s32.totalorder %s18, 0
      %p59 = por %p57, %p58
      %s61 = sadd.s32 %s60, 1
      %p64 = scmp.eq.s32.totalorder %s12, 1
      %p65 = scmp.ne.s32.totalorder %s60, %s62
      %p66 = scmp.eq.s32.totalorder %s12, 0
      %p67 = por %p65, %p66
      %p68 = scmp.ne.s32.totalorder %s60, %s62
      %p69 = scmp.eq.s32.totalorder %s17, 1
      %p70 = por %p68, %p69
      %p71 = scmp.ne.s32.totalorder %s62, %s63
      %p72 = scmp.eq.s32.totalorder %s17, 0
      %p73 = por %p71, %p72
      %p74 = scmp.ne.s32.totalorder %s62, %s63
      %p75 = scmp.eq.s32.totalorder %s18, 1
      %p76 = por %p74, %p75
      %p78 = scmp.ne.s32.totalorder %s63, %s77
      %p79 = scmp.eq.s32.totalorder %s18, 0
      %p80 = por %p78, %p79
      %s82 = sadd.s32 %s81, 1
      %p85 = scmp.eq.s32.totalorder %s12, 1
      %p86 = scmp.ne.s32.totalorder %s81, %s83
      %p87 = scmp.eq.s32.totalorder %s12, 0
      %p88 = por %p86, %p87
      %p89 = scmp.ne.s32.totalorder %s81, %s83
      %p90 = scmp.eq.s32.totalorder %s17, 1
      %p91 = por %p89, %p90
      %p92 = scmp.ne.s32.totalorder %s83, %s84
      %p93 = scmp.eq.s32.totalorder %s17, 0
      %p94 = por %p92, %p93
      %p95 = scmp.ne.s32.totalorder %s83, %s84
      %p96 = scmp.eq.s32.totalorder %s18, 1
      %p97 = por %p95, %p96
      %p99 = scmp.ne.s32.totalorder %s84, %s98
      %p100 = scmp.eq.s32.totalorder %s18, 0
      %p101 = por %p99, %p100
      %s102 = ssub.s32 %s19, %s31
      %s103 = ssub.s32 %s20, %s27
      %s104 = sor.u32 %s102, %s103
      %p105 = scmp.eq.s32.totalorder %s104, 0
      %s107 = sadd.s32 %s106, 1
      %s108 = scalar_select %p105, %s106, %s107
      %p111 = pneg %p105
      %p112 = scmp.eq.s32.totalorder %s12, 1
      %p113 = por %p111, %p112
      %p114 = scmp.ne.s32.totalorder %s106, %s109
      %p115 = scmp.eq.s32.totalorder %s12, 0
      %p116 = por %p114, %p115
      %p117 = scmp.ne.s32.totalorder %s106, %s109
      %p118 = scmp.eq.s32.totalorder %s17, 1
      %p119 = por %p117, %p118
      %p120 = scmp.ne.s32.totalorder %s109, %s110
      %p121 = scmp.eq.s32.totalorder %s17, 0
      %p122 = por %p120, %p121
      %p123 = scmp.ne.s32.totalorder %s109, %s110
      %p124 = scmp.eq.s32.totalorder %s18, 1
      %p125 = por %p123, %p124
      %p127 = scmp.ne.s32.totalorder %s110, %s126
      %p128 = scmp.eq.s32.totalorder %s18, 0
      %p129 = por %p127, %p128
      %p130 = scmp.le.s32.totalorder 1, %s12
      %p131 = scmp.lt.s32.totalorder %s12, 3
      %p132 = pnand %p130, %p131
      %p133 = pneg %p132
      // Predicated region
      $region9: #{tpu_custom_call.1} parent=5 // pred_check
        _
      $region10: #{tpu_custom_call.1} parent=5 // pred_check_branch
        %135 = sbr.rel (%p132) target = $region12
      $region11: #{tpu_custom_call.1} parent=5 // pred_region
        %s136 = ssub.s32 %s12, 1
        // Predicated region
        $region13: #{tpu_custom_call.1} parent=11 // pred_check
          %p137 = pneg %p73
        $region14: #{tpu_custom_call.1} parent=11 // pred_check_branch
          %139 = sbr.rel (%p137) target = $region16
        $region15: #{tpu_custom_call.1} parent=11 // pred_region
          _
        $region16: #{tpu_custom_call.1} parent=11 // pred_fallthru
          _
        // Predicated region
        $region17: #{tpu_custom_call.1} parent=11 // pred_check
          %p140 = pneg %p94
        $region18: #{tpu_custom_call.1} parent=11 // pred_check_branch
          %142 = sbr.rel (%p140) target = $region20
        $region19: #{tpu_custom_call.1} parent=11 // pred_region
          _
        $region20: #{tpu_custom_call.1} parent=11 // pred_fallthru
          _
      $region12: #{tpu_custom_call.1} parent=5 // pred_fallthru
        _
      %p143 = scmp.lt.s32.totalorder %s12, 2
      // Predicated region
      $region21: #{tpu_custom_call.1} parent=5 // pred_check
        %p144 = pneg %p143
      $region22: #{tpu_custom_call.1} parent=5 // pred_check_branch
        %146 = sbr.rel (%p144) target = $region24
      $region23: #{tpu_custom_call.1} parent=5 // pred_region
        // Predicated region
        $region25: #{tpu_custom_call.1} parent=23 // pred_check
          %p147 = pneg %p46
        $region26: #{tpu_custom_call.1} parent=23 // pred_check_branch
          %149 = sbr.rel (%p147) target = $region28
        $region27: #{tpu_custom_call.1} parent=23 // pred_region
          %s150 = smul.u32 2, %s20
          %p151 = scmp.lt.s32.totalorder %s19, 1
          %s152 = scalar_select %p151, %s19, 1
          %p153 = scmp.lt.s32.totalorder %s150, 1
          %s154 = scalar_select %p153, %s150, 1
          %s155 = smul.addr %s152, 8
          %s156 = sadd.s32 %s154, %s155
          %s157 = smul.addr %s156, 8
          %s158 = scalar_lea.vmem %s0, %s157
          %s159 = smul.u32 2, %s20
        $region28: #{tpu_custom_call.1} parent=23 // pred_fallthru
          _
      $region24: #{tpu_custom_call.1} parent=5 // pred_fallthru
        _
      %p160 = scmp.le.s32.totalorder 1, %s12
      %p161 = scmp.lt.s32.totalorder %s12, 3
      %p162 = pnand %p160, %p161
      %p163 = pneg %p162
      // Predicated region
      $region29: #{tpu_custom_call.1} parent=5 // pred_check
        _
      $region30: #{tpu_custom_call.1} parent=5 // pred_check_branch
        %165 = sbr.rel (%p162) target = $region32
      $region31: #{tpu_custom_call.1} parent=5 // pred_region
        %s166 = ssub.s32 %s12, 1
        %s167 = smul.u32 2, %s22
        %p168 = scmp.lt.s32.totalorder %s21, 1
        %s169 = scalar_select %p168, %s21, 1
        %p170 = scmp.lt.s32.totalorder %s167, 1
        %s171 = scalar_select %p170, %s167, 1
        %s172 = smul.addr %s169, 8
        %s173 = sadd.s32 %s171, %s172
        %s174 = smul.addr %s173, 8
        %s175 = scalar_lea.vmem %s0, %s174
        %p176 = pneg %p52
        %p177 = pneg %p49
        %p178 = pneg %p73
        %p179 = pneg %p70
        %p180 = pneg %p94
        %p181 = pneg %p91
        %p182 = pneg %p122
        %p183 = pneg %p119
        %s184 = sand.u32 %s109, 1
        %s185 = scalar_lea.sflag [#allocation3], %s184
        %s186 = sand.u32 %s109, 1
        %s187 = smul.addr %s186, 192
        %s188 = scalar_lea.vmem [#allocation2], %s187
        %s189 = smul.u32 2, %s22
        %p190 = scmp.lt.s32.totalorder %s21, 1
        %s191 = scalar_select %p190, %s21, 1
        %p192 = scmp.lt.s32.totalorder %s189, 1
        %s193 = scalar_select %p192, %s189, 1
        %s194 = smul.addr %s191, 8
        %s195 = sadd.s32 %s193, %s194
        %s196 = smul.addr %s195, 8
        %s197 = scalar_lea.vmem %s0, %s196
        %s198 = smul.u32 2, %s22
        %s199 = smul.u32 2, %s22
        %v200 = vld [vmem:[%s1] sm:$0xff]
        %v201 = vld [vmem:[%s1 + $0x8] sm:$0xff]
        %v202 = vld [vmem:[%s1 + $0x10] sm:$0xff]
        %v203 = vld [vmem:[%s1 + $0x18] sm:$0xff]
        %v204 = vld [vmem:[%s1 + $0x20] sm:$0xff]
        %v205 = vld [vmem:[%s1 + $0x28] sm:$0xff]
        %v206 = vld [vmem:[%s1 + $0x30] sm:$0xff]
        %v207 = vld [vmem:[%s1 + $0x38] sm:$0xff]
        %v208 = vld [vmem:[%s1 + $0x40] sm:$0xff]
        %v209 = vld [vmem:[%s1 + $0x48] sm:$0xff]
        %v210 = vld [vmem:[%s1 + $0x50] sm:$0xff]
        %v211 = vld [vmem:[%s1 + $0x58] sm:$0xff]
        %v212 = vld [vmem:[%s197] sm:$0xff]
        %v213 = vld [vmem:[%s197 + $0x8] sm:$0xff]
        %v214 = vld [vmem:[%s197 + $0x10] sm:$0xff]
        %v215 = vld [vmem:[%s197 + $0x18] sm:$0xff]
        %v216 = vld [vmem:[%s197 + $0x20] sm:$0xff]
        %v217 = vld [vmem:[%s197 + $0x28] sm:$0xff]
        %v218 = vld [vmem:[%s197 + $0x30] sm:$0xff]
        %v219 = vld [vmem:[%s197 + $0x38] sm:$0xff]
        %v220 = vld [vmem:[%s2] sm:$0xff]
        %v221 = vld [vmem:[%s2 + $0x8] sm:$0xff]
        %v222 = vld [vmem:[%s2 + $0x10] sm:$0xff]
        %v223 = vld [vmem:[%s2 + $0x18] sm:$0xff]
        %v224 = vld [vmem:[%s2 + $0x20] sm:$0xff]
        %v225 = vld [vmem:[%s2 + $0x28] sm:$0xff]
        %v226 = vld [vmem:[%s2 + $0x30] sm:$0xff]
        %v227 = vld [vmem:[%s2 + $0x38] sm:$0xff]
        %v228 = vld [vmem:[%s2 + $0x40] sm:$0xff]
        %v229 = vld [vmem:[%s2 + $0x48] sm:$0xff]
        %v230 = vld [vmem:[%s2 + $0x50] sm:$0xff]
        %v231 = vld [vmem:[%s2 + $0x58] sm:$0xff]
        %233 = vset.pattern.permute.xlu0 0
        %234 = vperm.xlu0 %233, %v220
        %v235 = vpop.permute.xlu0 %234
        %238 = vset.pattern.permute.xlu0 0
        %239 = vperm.xlu0 %238, %v221
        %v240 = vpop.permute.xlu0 %239
        %243 = vset.pattern.permute.xlu0 0
        %244 = vperm.xlu0 %243, %v222
        %v245 = vpop.permute.xlu0 %244
        %248 = vset.pattern.permute.xlu0 0
        %249 = vperm.xlu0 %248, %v223
        %v250 = vpop.permute.xlu0 %249
        %253 = vset.pattern.permute.xlu0 0
        %254 = vperm.xlu0 %253, %v224
        %v255 = vpop.permute.xlu0 %254
        %258 = vset.pattern.permute.xlu0 0
        %259 = vperm.xlu0 %258, %v225
        %v260 = vpop.permute.xlu0 %259
        %263 = vset.pattern.permute.xlu0 0
        %264 = vperm.xlu0 %263, %v226
        %v265 = vpop.permute.xlu0 %264
        %268 = vset.pattern.permute.xlu0 0
        %269 = vperm.xlu0 %268, %v227
        %v270 = vpop.permute.xlu0 %269
        %273 = vset.pattern.permute.xlu0 0
        %274 = vperm.xlu0 %273, %v228
        %v275 = vpop.permute.xlu0 %274
        %278 = vset.pattern.permute.xlu0 0
        %279 = vperm.xlu0 %278, %v229
        %v280 = vpop.permute.xlu0 %279
        %283 = vset.pattern.permute.xlu0 0
        %284 = vperm.xlu0 %283, %v230
        %v285 = vpop.permute.xlu0 %284
        %288 = vset.pattern.permute.xlu0 0
        %289 = vperm.xlu0 %288, %v231
        %v290 = vpop.permute.xlu0 %289
        %vm292 = vcmask 261120
        %v294 = vsel %vm292, %v200, 0
        %v297 = vsel %vm292, %v201, 0
        %v300 = vsel %vm292, %v202, 0
        %v303 = vsel %vm292, %v203, 0
        %v306 = vsel %vm292, %v204, 0
        %v309 = vsel %vm292, %v205, 0
        %v312 = vsel %vm292, %v206, 0
        %v315 = vsel %vm292, %v207, 0
        %v318 = vsel %vm292, %v208, 0
        %v321 = vsel %vm292, %v209, 0
        %v324 = vsel %vm292, %v210, 0
        %v327 = vsel %vm292, %v211, 0
        %329 = vmatprep.subr.mxu0 %v213
        %330 = vmatpush1.msra.mxu0 %v212
        %331 = vmatprep.subr.mxu0 %v215
        %332 = vmatpush1.msra.mxu0 %v214
        %333 = vmatprep.subr.mxu0 %v217
        %334 = vmatpush1.msra.mxu0 %v216
        %335 = vmatprep.subr.mxu0 %v219
        %336 = vmatpush1.msra.mxu0 %v218
        %337 = vmatprep.subr.mxu0 0.0
        %338 = vmatpush1.msra.mxu0 0.0
        %339 = vmatprep.subr.mxu0 0.0
        %340 = vmatpush1.msra.mxu0 0.0
        %341 = vmatprep.subr.mxu0 0.0
        %342 = vmatpush1.msra.mxu0 0.0
        %343 = vmatprep.subr.mxu0 0.0
        %344 = vmatpush1.msra.mxu0 0.0
        %345 = vmatprep.subr.mxu0 0.0
        %346 = vmatpush1.msra.mxu0 0.0
        %347 = vmatprep.subr.mxu0 0.0
        %348 = vmatpush1.msra.mxu0 0.0
        %349 = vmatprep.subr.mxu0 0.0
        %350 = vmatpush1.msra.mxu0 0.0
        %351 = vmatprep.subr.mxu0 0.0
        %352 = vmatpush1.msra.mxu0 0.0
        %353 = vmatprep.subr.mxu0 0.0
        %354 = vmatpush1.msra.mxu0 0.0
        %355 = vmatprep.subr.mxu0 0.0
        %356 = vmatpush1.msra.mxu0 0.0
        %357 = vmatprep.subr.mxu0 0.0
        %358 = vmatpush1.msra.mxu0 0.0
        %359 = vmatprep.subr.mxu0 0.0
        %360 = vmatpush1.msra.mxu0 0.0
        %361 = vmatprep.subr.mxu0 0.0
        %362 = vmatpush1.msra.mxu0 0.0
        %363 = vmatprep.subr.mxu0 0.0
        %364 = vmatpush1.msra.mxu0 0.0
        %365 = vmatprep.subr.mxu0 0.0
        %366 = vmatpush1.msra.mxu0 0.0
        %367 = vmatprep.subr.mxu0 0.0
        %368 = vmatpush1.msra.mxu0 0.0
        %369 = vmatprep.subr.mxu0 0.0
        %370 = vmatpush1.msra.mxu0 0.0
        %371 = vmatprep.subr.mxu0 0.0
        %372 = vmatpush1.msra.mxu0 0.0
        %373 = vmatprep.subr.mxu0 0.0
        %374 = vmatpush1.msra.mxu0 0.0
        %375 = vmatprep.subr.mxu0 0.0
        %376 = vmatpush1.msra.mxu0 0.0
        %377 = vmatprep.subr.mxu0 0.0
        %378 = vmatpush1.msra.mxu0 0.0
        %379 = vmatprep.subr.mxu0 0.0
        %380 = vmatpush1.msra.mxu0 0.0
        %381 = vmatprep.subr.mxu0 0.0
        %382 = vmatpush1.msra.mxu0 0.0
        %383 = vmatprep.subr.mxu0 0.0
        %384 = vmatpush1.msra.mxu0 0.0
        %385 = vmatprep.subr.mxu0 0.0
        %386 = vmatpush1.msra.mxu0 0.0
        %387 = vmatprep.subr.mxu0 0.0
        %388 = vmatpush1.msra.mxu0 0.0
        %389 = vmatprep.subr.mxu0 0.0
        %390 = vmatpush1.msra.mxu0 0.0
        %391 = vmatprep.subr.mxu0 0.0
        %392 = vmatpush1.msra.mxu0 0.0
        %393 = vmatprep.mubr.f32.mxu0 0.0
        %394 = vmatmul.mubr.f32.gmra.mrb[0].mxu0 %v294
        %v395 = vpop.f32.mrb[0].mxu0
        %v396 = vadd.f32 %v235, %v395
        %v397 = vpop.f32.mrb[0].mxu0
        %v398 = vadd.f32 %v235, %v397
        %399 = vmatprep.mubr.f32.mxu0 0.0
        %400 = vmatmul.mubr.f32.gmra.mrb[0].mxu0 %v297
        %v401 = vpop.f32.mrb[0].mxu0
        %v402 = vadd.f32 %v240, %v401
        %v403 = vpop.f32.mrb[0].mxu0
        %v404 = vadd.f32 %v240, %v403
        %405 = vmatprep.mubr.f32.mxu0 0.0
        %406 = vmatmul.mubr.f32.gmra.mrb[0].mxu0 %v300
        %v407 = vpop.f32.mrb[0].mxu0
        %v408 = vadd.f32 %v245, %v407
        %v409 = vpop.f32.mrb[0].mxu0
        %v410 = vadd.f32 %v245, %v409
        %411 = vmatprep.mubr.f32.mxu0 0.0
        %412 = vmatmul.mubr.f32.gmra.mrb[0].mxu0 %v303
        %v413 = vpop.f32.mrb[0].mxu0
        %v414 = vadd.f32 %v250, %v413
        %v415 = vpop.f32.mrb[0].mxu0
        %v416 = vadd.f32 %v250, %v415
        %417 = vmatprep.mubr.f32.mxu0 0.0
        %418 = vmatmul.mubr.f32.gmra.mrb[0].mxu0 %v306
        %v419 = vpop.f32.mrb[0].mxu0
        %v420 = vadd.f32 %v255, %v419
        %v421 = vpop.f32.mrb[0].mxu0
        %v422 = vadd.f32 %v255, %v421
        %423 = vmatprep.mubr.f32.mxu0 0.0
        %424 = vmatmul.mubr.f32.gmra.mrb[0].mxu0 %v309
        %v425 = vpop.f32.mrb[0].mxu0
        %v426 = vadd.f32 %v260, %v425
        %v427 = vpop.f32.mrb[0].mxu0
        %v428 = vadd.f32 %v260, %v427
        %429 = vmatprep.mubr.f32.mxu0 0.0
        %430 = vmatmul.mubr.f32.gmra.mrb[0].mxu0 %v312
        %v431 = vpop.f32.mrb[0].mxu0
        %v432 = vadd.f32 %v265, %v431
        %v433 = vpop.f32.mrb[0].mxu0
        %v434 = vadd.f32 %v265, %v433
        %435 = vmatprep.mubr.f32.mxu0 0.0
        %436 = vmatmul.mubr.f32.gmra.mrb[0].mxu0 %v315
        %v437 = vpop.f32.mrb[0].mxu0
        %v438 = vadd.f32 %v270, %v437
        %v439 = vpop.f32.mrb[0].mxu0
        %v440 = vadd.f32 %v270, %v439
        %441 = vmatprep.mubr.f32.mxu0 0.0
        %442 = vmatmul.mubr.f32.gmra.mrb[0].mxu0 %v318
        %v443 = vpop.f32.mrb[0].mxu0
        %v444 = vadd.f32 %v275, %v443
        %v445 = vpop.f32.mrb[0].mxu0
        %v446 = vadd.f32 %v275, %v445
        %447 = vmatprep.mubr.f32.mxu0 0.0
        %448 = vmatmul.mubr.f32.gmra.mrb[0].mxu0 %v321
        %v449 = vpop.f32.mrb[0].mxu0
        %v450 = vadd.f32 %v280, %v449
        %v451 = vpop.f32.mrb[0].mxu0
        %v452 = vadd.f32 %v280, %v451
        %453 = vmatprep.mubr.f32.mxu0 0.0
        %454 = vmatmul.mubr.f32.gmra.mrb[0].mxu0 %v324
        %v455 = vpop.f32.mrb[0].mxu0
        %v456 = vadd.f32 %v285, %v455
        %v457 = vpop.f32.mrb[0].mxu0
        %v458 = vadd.f32 %v285, %v457
        %459 = vmatprep.mubr.f32.mxu0 0.0
        %460 = vmatmul.mubr.f32.gmra.mrb[0].mxu0 %v327
        %v461 = vpop.f32.mrb[0].mxu0
        %v462 = vadd.f32 %v290, %v461
        %v463 = vpop.f32.mrb[0].mxu0
        %v464 = vadd.f32 %v290, %v463
        %465 = vdwg.mxu0
        %466 = vst [vmem:[%s188] sm:$0xff] %v396
        %467 = vst [vmem:[%s188 + $0x8] sm:$0xff] %v398
        %468 = vst [vmem:[%s188 + $0x10] sm:$0xff] %v402
        %469 = vst [vmem:[%s188 + $0x18] sm:$0xff] %v404
        %470 = vst [vmem:[%s188 + $0x20] sm:$0xff] %v408
        %471 = vst [vmem:[%s188 + $0x28] sm:$0xff] %v410
        %472 = vst [vmem:[%s188 + $0x30] sm:$0xff] %v414
        %473 = vst [vmem:[%s188 + $0x38] sm:$0xff] %v416
        %474 = vst [vmem:[%s188 + $0x40] sm:$0xff] %v420
        %475 = vst [vmem:[%s188 + $0x48] sm:$0xff] %v422
        %476 = vst [vmem:[%s188 + $0x50] sm:$0xff] %v426
        %477 = vst [vmem:[%s188 + $0x58] sm:$0xff] %v428
        %478 = vst [vmem:[%s188 + $0x60] sm:$0xff] %v432
        %479 = vst [vmem:[%s188 + $0x68] sm:$0xff] %v434
        %480 = vst [vmem:[%s188 + $0x70] sm:$0xff] %v438
        %481 = vst [vmem:[%s188 + $0x78] sm:$0xff] %v440
        %482 = vst [vmem:[%s188 + $0x80] sm:$0xff] %v444
        %483 = vst [vmem:[%s188 + $0x88] sm:$0xff] %v446
        %484 = vst [vmem:[%s188 + $0x90] sm:$0xff] %v450
        %485 = vst [vmem:[%s188 + $0x98] sm:$0xff] %v452
        %486 = vst [vmem:[%s188 + $0xa0] sm:$0xff] %v456
        %487 = vst [vmem:[%s188 + $0xa8] sm:$0xff] %v458
        %488 = vst [vmem:[%s188 + $0xb0] sm:$0xff] %v462
        %489 = vst [vmem:[%s188 + $0xb8] sm:$0xff] %v464
        %s490 = sand.u32 %s109, 1
        %s491 = scalar_lea.sflag [#allocation3], %s490
        %s492 = sand.u32 %s109, 1
        %s493 = smul.addr %s492, 192
        %s494 = scalar_lea.vmem [#allocation2], %s493
        // Predicated region
        $region33: #{tpu_custom_call.1} parent=31 // pred_check
          %p495 = pneg %p119
        $region34: #{tpu_custom_call.1} parent=31 // pred_check_branch
          %497 = sbr.rel (%p495) target = $region36
        $region35: #{tpu_custom_call.1} parent=31 // pred_region
          %s498 = smul.u32 2, %s22
          %s500 = ssub.s32 3072, 3072
          %501 = vsyncadd %s491, %s500
          %s502 = smul.addr %s21, 24
          %s503 = sadd.s32 %s498, %s502
          %s504 = smul.addr %s503, 128
          %s505 = scalar_lea.hbm %s3, %s504
          %s506 = sshll.u32 %s494, 4
          %s507 = int_to_ptr.vmem [resolvable:$true] %s506
          %512 = dma.vmem_to_hbm [thread:$0]  %s507, 3072, %s505, %s491, 256, 256, 16
        $region36: #{tpu_custom_call.1} parent=31 // pred_fallthru
          _
      $region32: #{tpu_custom_call.1} parent=5 // pred_fallthru
        _
      %p513 = scmp.le.s32.totalorder 2, %s12
      // Predicated region
      $region37: #{tpu_custom_call.1} parent=5 // pred_check
        %p514 = pneg %p513
      $region38: #{tpu_custom_call.1} parent=5 // pred_check_branch
        %516 = sbr.rel (%p514) target = $region40
      $region39: #{tpu_custom_call.1} parent=5 // pred_region
        %s517 = ssub.s32 %s12, 2
        // Predicated region
        $region41: #{tpu_custom_call.1} parent=39 // pred_check
          %p518 = pneg %p125
        $region42: #{tpu_custom_call.1} parent=39 // pred_check_branch
          %520 = sbr.rel (%p518) target = $region44
        $region43: #{tpu_custom_call.1} parent=39 // pred_region
          %s521 = sand.u32 %s110, 1
          %s522 = scalar_lea.sflag [#allocation3], %s521
          %s523 = sand.u32 %s110, 1
          %s524 = smul.addr %s523, 192
          %s525 = scalar_lea.vmem [#allocation2], %s524
          %526 = dma.done %s522, 3072
        $region44: #{tpu_custom_call.1} parent=39 // pred_fallthru
          _
      $region40: #{tpu_custom_call.1} parent=5 // pred_fallthru
        _
    $region6: #{tpu_custom_call.1} parent=1 // loop_footer
      %s16 = sadd.s32 1, %s12
    $region7: #{tpu_custom_call.1} parent=1 // loop_footer_branch
      %11 = sbr.rel target = $region3
    $region8: #{tpu_custom_call.1} parent=1 // loop_exit
      _
    %527 = vsyncpa [#allocation3], 1
    %s528 = scalar_lea.sflag [#allocation3], 1
    %529 = vsyncpa %s528, 1

// kernel: tpu_custom_call.1
$region0: #{tpu_custom_call.1}
  #allocation0 [shape = 'u32[]', space=smem, size = 0x4, offset = 0x4, fixed_abs, tag = 'smem constant byte address 0x4 - core index']
  #allocation1 [shape = 'u32[144,128]{1,0:T(1,128)}', space=vmem, size = 0x12000, scoped, tag = 'internal scratch']
  %s0 = inlined_call_operand.vmem [shape: f32[2,32,256], index: 0, kind: input, shape index: {}]
  %s1 = inlined_call_operand.vmem [shape: f32[96,32], index: 1, kind: input, shape index: {}]
  %s2 = inlined_call_operand.vmem [shape: f32[96,1], index: 2, kind: input, shape index: {}]
  %s3 = inlined_call_operand.hbm [shape: f32[2,96,256], index: 3, kind: output, shape index: {}]
  %s4 = sld [smem:[#allocation0]]
  $region45: #{tpu_custom_call.1} parent=0
    _
  %s6 = ssub.s32 1, %s4
  %s7 = scalar_select 0, %s6, %s4
  $region1: #{tpu_custom_call.1} parent=0
    #allocation2 [shape = 'u8[196608]{0}', space=vmem, size = 0x30000, scoped, tag = 'output window, operand 0']
    #allocation3 [shape = 's32[2]{0}', space=sflag, size = 0x8, scoped, tag = 'scoped memory for tpu_custom_call.1']
    %8 = vsyncpa [#allocation3], 0
    %s9 = scalar_lea.sflag [#allocation3], 1
    %10 = vsyncpa %s9, 0
    loop: start=0, step=1, limit=4
    $region2: #{tpu_custom_call.1} parent=1 // loop_pre_header
      _
    $region3: #{tpu_custom_call.1} parent=1 // loop_header
      %s12 = sphi 0, %s16
      %p13 = scmp.ge.s32.totalorder %s12, 4
      %s19 = sphi 0, %s31
      %s20 = sphi 0, %s27
      %s21 = sphi 0, %s19
      %s22 = sphi 0, %s20
      %s23 = sphi 0, %s21
      %s24 = sphi 0, %s22
      %s36 = sphi 0, %s38
      %s39 = sphi 0, %s36
      %s40 = sphi 0, %s39
      %s56 = sphi 0, %s40
      %s60 = sphi 0, %s60
      %s62 = sphi 0, %s60
      %s63 = sphi 0, %s62
      %s77 = sphi 0, %s63
      %s81 = sphi 0, %s81
      %s83 = sphi 0, %s81
      %s84 = sphi 0, %s83
      %s98 = sphi 0, %s84
      %s106 = sphi 0, %s108
      %s109 = sphi 0, %s106
      %s110 = sphi 0, %s109
      %s126 = sphi 0, %s110
    $region4: #{tpu_custom_call.1} parent=1 // loop_header_branch
      %15 = sbr.rel (%p13) target = $region8
    $region5: #{tpu_custom_call.1} parent=1 // loop_body
      %s17 = ssub.s32 %s12, 1
      %s18 = ssub.s32 %s12, 2
      %s25 = sadd.s32 1, %s20
      %p26 = scmp.ge.s32.totalorder %s25, 1
      %s27 = scalar_select %p26, 0, %s25
      %s28 = sadd.s32 1, %s19
      %s29 = scalar_select %p26, %s28, %s19
      %p30 = scmp.ge.s32.totalorder %s29, 2
      %s31 = scalar_select %p30, 0, %s29
      %s32 = ssub.s32 %s19, %s31
      %s33 = ssub.s32 %s20, %s27
      %s34 = sor.u32 %s32, %s33
      %p35 = scmp.eq.s32.totalorder %s34, 0
      %s37 = sadd.s32 %s36, 1
      %s38 = scalar_select %p35, %s36, %s37
      %p41 = pneg %p35
      %p42 = scmp.eq.s32.totalorder %s12, 1
      %p43 = por %p41, %p42
      %p44 = scmp.ne.s32.totalorder %s36, %s39
      %p45 = scmp.eq.s32.totalorder %s12, 0
      %p46 = por %p44, %p45
      %p47 = scmp.ne.s32.totalorder %s36, %s39
      %p48 = scmp.eq.s32.totalorder %s17, 1
      %p49 = por %p47, %p48
      %p50 = scmp.ne.s32.totalorder %s39, %s40
      %p51 = scmp.eq.s32.totalorder %s17, 0
      %p52 = por %p50, %p51
      %p53 = scmp.ne.s32.totalorder %s39, %s40
      %p54 = scmp.eq.s32.totalorder %s18, 1
      %p55 = por %p53, %p54
      %p57 = scmp.ne.s32.totalorder %s40, %s56
      %p58 = scmp.eq.s32.totalorder %s18, 0
      %p59 = por %p57, %p58
      %s61 = sadd.s32 %s60, 1
      %p64 = scmp.eq.s32.totalorder %s12, 1
      %p65 = scmp.ne.s32.totalorder %s60, %s62
      %p66 = scmp.eq.s32.totalorder %s12, 0
      %p67 = por %p65, %p66
      %p68 = scmp.ne.s32.totalorder %s60, %s62
      %p69 = scmp.eq.s32.totalorder %s17, 1
      %p70 = por %p68, %p69
      %p71 = scmp.ne.s32.totalorder %s62, %s63
      %p72 = scmp.eq.s32.totalorder %s17, 0
      %p73 = por %p71, %p72
      %p74 = scmp.ne.s32.totalorder %s62, %s63
      %p75 = scmp.eq.s32.totalorder %s18, 1
      %p76 = por %p74, %p75
      %p78 = scmp.ne.s32.totalorder %s63, %s77
      %p79 = scmp.eq.s32.totalorder %s18, 0
      %p80 = por %p78, %p79
      %s82 = sadd.s32 %s81, 1
      %p85 = scmp.eq.s32.totalorder %s12, 1
      %p86 = scmp.ne.s32.totalorder %s81, %s83
      %p87 = scmp.eq.s32.totalorder %s12, 0
      %p88 = por %p86, %p87
      %p89 = scmp.ne.s32.totalorder %s81, %s83
      %p90 = scmp.eq.s32.totalorder %s17, 1
      %p91 = por %p89, %p90
      %p92 = scmp.ne.s32.totalorder %s83, %s84
      %p93 = scmp.eq.s32.totalorder %s17, 0
      %p94 = por %p92, %p93
      %p95 = scmp.ne.s32.totalorder %s83, %s84
      %p96 = scmp.eq.s32.totalorder %s18, 1
      %p97 = por %p95, %p96
      %p99 = scmp.ne.s32.totalorder %s84, %s98
      %p100 = scmp.eq.s32.totalorder %s18, 0
      %p101 = por %p99, %p100
      %s102 = ssub.s32 %s19, %s31
      %s103 = ssub.s32 %s20, %s27
      %s104 = sor.u32 %s102, %s103
      %p105 = scmp.eq.s32.totalorder %s104, 0
      %s107 = sadd.s32 %s106, 1
      %s108 = scalar_select %p105, %s106, %s107
      %p111 = pneg %p105
      %p112 = scmp.eq.s32.totalorder %s12, 1
      %p113 = por %p111, %p112
      %p114 = scmp.ne.s32.totalorder %s106, %s109
      %p115 = scmp.eq.s32.totalorder %s12, 0
      %p116 = por %p114, %p115
      %p117 = scmp.ne.s32.totalorder %s106, %s109
      %p118 = scmp.eq.s32.totalorder %s17, 1
      %p119 = por %p117, %p118
      %p120 = scmp.ne.s32.totalorder %s109, %s110
      %p121 = scmp.eq.s32.totalorder %s17, 0
      %p122 = por %p120, %p121
      %p123 = scmp.ne.s32.totalorder %s109, %s110
      %p124 = scmp.eq.s32.totalorder %s18, 1
      %p125 = por %p123, %p124
      %p127 = scmp.ne.s32.totalorder %s110, %s126
      %p128 = scmp.eq.s32.totalorder %s18, 0
      %p129 = por %p127, %p128
      %p130 = scmp.le.s32.totalorder 1, %s12
      %p131 = scmp.lt.s32.totalorder %s12, 3
      %p132 = pnand %p130, %p131
      %p133 = pneg %p132
      // Predicated region
      $region9: #{tpu_custom_call.1} parent=5 // pred_check
        _
      $region10: #{tpu_custom_call.1} parent=5 // pred_check_branch
        %135 = sbr.rel (%p132) target = $region12
      $region11: #{tpu_custom_call.1} parent=5 // pred_region
        %s136 = ssub.s32 %s12, 1
        // Predicated region
        $region13: #{tpu_custom_call.1} parent=11 // pred_check
          %p137 = pneg %p73
        $region14: #{tpu_custom_call.1} parent=11 // pred_check_branch
          %139 = sbr.rel (%p137) target = $region16
        $region15: #{tpu_custom_call.1} parent=11 // pred_region
          _
        $region16: #{tpu_custom_call.1} parent=11 // pred_fallthru
          _
        // Predicated region
        $region17: #{tpu_custom_call.1} parent=11 // pred_check
          %p140 = pneg %p94
        $region18: #{tpu_custom_call.1} parent=11 // pred_check_branch
          %142 = sbr.rel (%p140) target = $region20
        $region19: #{tpu_custom_call.1} parent=11 // pred_region
          _
        $region20: #{tpu_custom_call.1} parent=11 // pred_fallthru
          _
      $region12: #{tpu_custom_call.1} parent=5 // pred_fallthru
        _
      %p143 = scmp.lt.s32.totalorder %s12, 2
      // Predicated region
      $region21: #{tpu_custom_call.1} parent=5 // pred_check
        %p144 = pneg %p143
      $region22: #{tpu_custom_call.1} parent=5 // pred_check_branch
        %146 = sbr.rel (%p144) target = $region24
      $region23: #{tpu_custom_call.1} parent=5 // pred_region
        // Predicated region
        $region25: #{tpu_custom_call.1} parent=23 // pred_check
          %p147 = pneg %p46
        $region26: #{tpu_custom_call.1} parent=23 // pred_check_branch
          %149 = sbr.rel (%p147) target = $region28
        $region27: #{tpu_custom_call.1} parent=23 // pred_region
          %s150 = smul.u32 2, %s20
          %p151 = scmp.lt.s32.totalorder %s19, 1
          %s152 = scalar_select %p151, %s19, 1
          %p153 = scmp.lt.s32.totalorder %s150, 1
          %s154 = scalar_select %p153, %s150, 1
          %s155 = smul.addr %s152, 8
          %s156 = sadd.s32 %s154, %s155
          %s157 = smul.addr %s156, 8
          %s158 = scalar_lea.vmem %s0, %s157
          %s159 = smul.u32 2, %s20
        $region28: #{tpu_custom_call.1} parent=23 // pred_fallthru
          _
      $region24: #{tpu_custom_call.1} parent=5 // pred_fallthru
        _
      %p160 = scmp.le.s32.totalorder 1, %s12
      %p161 = scmp.lt.s32.totalorder %s12, 3
      %p162 = pnand %p160, %p161
      %p163 = pneg %p162
      // Predicated region
      $region29: #{tpu_custom_call.1} parent=5 // pred_check
        _
      $region30: #{tpu_custom_call.1} parent=5 // pred_check_branch
        %165 = sbr.rel (%p162) target = $region32
      $region31: #{tpu_custom_call.1} parent=5 // pred_region
        %s166 = ssub.s32 %s12, 1
        %s167 = smul.u32 2, %s22
        %p168 = scmp.lt.s32.totalorder %s21, 1
        %s169 = scalar_select %p168, %s21, 1
        %p170 = scmp.lt.s32.totalorder %s167, 1
        %s171 = scalar_select %p170, %s167, 1
        %s172 = smul.addr %s169, 8
        %s173 = sadd.s32 %s171, %s172
        %s174 = smul.addr %s173, 8
        %s175 = scalar_lea.vmem %s0, %s174
        %p176 = pneg %p52
        %p177 = pneg %p49
        %p178 = pneg %p73
        %p179 = pneg %p70
        %p180 = pneg %p94
        %p181 = pneg %p91
        %p182 = pneg %p122
        %p183 = pneg %p119
        %s184 = sand.u32 %s109, 1
        %s185 = scalar_lea.sflag [#allocation3], %s184
        %s186 = sand.u32 %s109, 1
        %s187 = smul.addr %s186, 192
        %s188 = scalar_lea.vmem [#allocation2], %s187
        %s189 = smul.u32 2, %s22
        %p190 = scmp.lt.s32.totalorder %s21, 1
        %s191 = scalar_select %p190, %s21, 1
        %p192 = scmp.lt.s32.totalorder %s189, 1
        %s193 = scalar_select %p192, %s189, 1
        %s194 = smul.addr %s191, 8
        %s195 = sadd.s32 %s193, %s194
        %s196 = smul.addr %s195, 8
        %s197 = scalar_lea.vmem %s0, %s196
        %s198 = smul.u32 2, %s22
        %s199 = smul.u32 2, %s22
        %v200 = vld [vmem:[%s1] sm:$0xff]
        %v201 = vld [vmem:[%s1 + $0x8] sm:$0xff]
        %v202 = vld [vmem:[%s1 + $0x10] sm:$0xff]
        %v203 = vld [vmem:[%s1 + $0x18] sm:$0xff]
        %v204 = vld [vmem:[%s1 + $0x20] sm:$0xff]
        %v205 = vld [vmem:[%s1 + $0x28] sm:$0xff]
        %v206 = vld [vmem:[%s1 + $0x30] sm:$0xff]
        %v207 = vld [vmem:[%s1 + $0x38] sm:$0xff]
        %v208 = vld [vmem:[%s1 + $0x40] sm:$0xff]
        %v209 = vld [vmem:[%s1 + $0x48] sm:$0xff]
        %v210 = vld [vmem:[%s1 + $0x50] sm:$0xff]
        %v211 = vld [vmem:[%s1 + $0x58] sm:$0xff]
        %v212 = vld [vmem:[%s197] sm:$0xff]
        %v213 = vld [vmem:[%s197 + $0x8] sm:$0xff]
        %v214 = vld [vmem:[%s197 + $0x10] sm:$0xff]
        %v215 = vld [vmem:[%s197 + $0x18] sm:$0xff]
        %v216 = vld [vmem:[%s197 + $0x20] sm:$0xff]
        %v217 = vld [vmem:[%s197 + $0x28] sm:$0xff]
        %v218 = vld [vmem:[%s197 + $0x30] sm:$0xff]
        %v219 = vld [vmem:[%s197 + $0x38] sm:$0xff]
        %v220 = vld [vmem:[%s2] sm:$0xff]
        %v221 = vld [vmem:[%s2 + $0x8] sm:$0xff]
        %v222 = vld [vmem:[%s2 + $0x10] sm:$0xff]
        %v223 = vld [vmem:[%s2 + $0x18] sm:$0xff]
        %v224 = vld [vmem:[%s2 + $0x20] sm:$0xff]
        %v225 = vld [vmem:[%s2 + $0x28] sm:$0xff]
        %v226 = vld [vmem:[%s2 + $0x30] sm:$0xff]
        %v227 = vld [vmem:[%s2 + $0x38] sm:$0xff]
        %v228 = vld [vmem:[%s2 + $0x40] sm:$0xff]
        %v229 = vld [vmem:[%s2 + $0x48] sm:$0xff]
        %v230 = vld [vmem:[%s2 + $0x50] sm:$0xff]
        %v231 = vld [vmem:[%s2 + $0x58] sm:$0xff]
        %233 = vset.pattern.permute.xlu0 0
        %234 = vperm.xlu0 %233, %v220
        %v235 = vpop.permute.xlu0 %234
        %238 = vset.pattern.permute.xlu0 0
        %239 = vperm.xlu0 %238, %v221
        %v240 = vpop.permute.xlu0 %239
        %243 = vset.pattern.permute.xlu0 0
        %244 = vperm.xlu0 %243, %v222
        %v245 = vpop.permute.xlu0 %244
        %248 = vset.pattern.permute.xlu0 0
        %249 = vperm.xlu0 %248, %v223
        %v250 = vpop.permute.xlu0 %249
        %253 = vset.pattern.permute.xlu0 0
        %254 = vperm.xlu0 %253, %v224
        %v255 = vpop.permute.xlu0 %254
        %258 = vset.pattern.permute.xlu0 0
        %259 = vperm.xlu0 %258, %v225
        %v260 = vpop.permute.xlu0 %259
        %263 = vset.pattern.permute.xlu0 0
        %264 = vperm.xlu0 %263, %v226
        %v265 = vpop.permute.xlu0 %264
        %268 = vset.pattern.permute.xlu0 0
        %269 = vperm.xlu0 %268, %v227
        %v270 = vpop.permute.xlu0 %269
        %273 = vset.pattern.permute.xlu0 0
        %274 = vperm.xlu0 %273, %v228
        %v275 = vpop.permute.xlu0 %274
        %278 = vset.pattern.permute.xlu0 0
        %279 = vperm.xlu0 %278, %v229
        %v280 = vpop.permute.xlu0 %279
        %283 = vset.pattern.permute.xlu0 0
        %284 = vperm.xlu0 %283, %v230
        %v285 = vpop.permute.xlu0 %284
        %288 = vset.pattern.permute.xlu0 0
        %289 = vperm.xlu0 %288, %v231
        %v290 = vpop.permute.xlu0 %289
        %vm292 = vcmask 261120
        %v294 = vsel %vm292, %v200, 0
        %v297 = vsel %vm292, %v201, 0
        %v300 = vsel %vm292, %v202, 0
        %v303 = vsel %vm292, %v203, 0
        %v306 = vsel %vm292, %v204, 0
        %v309 = vsel %vm292, %v205, 0
        %v312 = vsel %vm292, %v206, 0
        %v315 = vsel %vm292, %v207, 0
        %v318 = vsel %vm292, %v208, 0
        %v321 = vsel %vm292, %v209, 0
        %v324 = vsel %vm292, %v210, 0
        %v327 = vsel %vm292, %v211, 0
        %329 = vmatprep.subr.mxu0 %v213
        %330 = vmatpush1.msra.mxu0 %v212
        %331 = vmatprep.subr.mxu0 %v215
        %332 = vmatpush1.msra.mxu0 %v214
        %333 = vmatprep.subr.mxu0 %v217
        %334 = vmatpush1.msra.mxu0 %v216
        %335 = vmatprep.subr.mxu0 %v219
        %336 = vmatpush1.msra.mxu0 %v218
        %337 = vmatprep.subr.mxu0 0.0
        %338 = vmatpush1.msra.mxu0 0.0
        %339 = vmatprep.subr.mxu0 0.0
        %340 = vmatpush1.msra.mxu0 0.0
        %341 = vmatprep.subr.mxu0 0.0
        %342 = vmatpush1.msra.mxu0 0.0
        %343 = vmatprep.subr.mxu0 0.0
        %344 = vmatpush1.msra.mxu0 0.0
        %345 = vmatprep.subr.mxu0 0.0
        %346 = vmatpush1.msra.mxu0 0.0
        %347 = vmatprep.subr.mxu0 0.0
        %348 = vmatpush1.msra.mxu0 0.0
        %349 = vmatprep.subr.mxu0 0.0
        %350 = vmatpush1.msra.mxu0 0.0
        %351 = vmatprep.subr.mxu0 0.0
        %352 = vmatpush1.msra.mxu0 0.0
        %353 = vmatprep.subr.mxu0 0.0
        %354 = vmatpush1.msra.mxu0 0.0
        %355 = vmatprep.subr.mxu0 0.0
        %356 = vmatpush1.msra.mxu0 0.0
        %357 = vmatprep.subr.mxu0 0.0
        %358 = vmatpush1.msra.mxu0 0.0
        %359 = vmatprep.subr.mxu0 0.0
        %360 = vmatpush1.msra.mxu0 0.0
        %361 = vmatprep.subr.mxu0 0.0
        %362 = vmatpush1.msra.mxu0 0.0
        %363 = vmatprep.subr.mxu0 0.0
        %364 = vmatpush1.msra.mxu0 0.0
        %365 = vmatprep.subr.mxu0 0.0
        %366 = vmatpush1.msra.mxu0 0.0
        %367 = vmatprep.subr.mxu0 0.0
        %368 = vmatpush1.msra.mxu0 0.0
        %369 = vmatprep.subr.mxu0 0.0
        %370 = vmatpush1.msra.mxu0 0.0
        %371 = vmatprep.subr.mxu0 0.0
        %372 = vmatpush1.msra.mxu0 0.0
        %373 = vmatprep.subr.mxu0 0.0
        %374 = vmatpush1.msra.mxu0 0.0
        %375 = vmatprep.subr.mxu0 0.0
        %376 = vmatpush1.msra.mxu0 0.0
        %377 = vmatprep.subr.mxu0 0.0
        %378 = vmatpush1.msra.mxu0 0.0
        %379 = vmatprep.subr.mxu0 0.0
        %380 = vmatpush1.msra.mxu0 0.0
        %381 = vmatprep.subr.mxu0 0.0
        %382 = vmatpush1.msra.mxu0 0.0
        %383 = vmatprep.subr.mxu0 0.0
        %384 = vmatpush1.msra.mxu0 0.0
        %385 = vmatprep.subr.mxu0 0.0
        %386 = vmatpush1.msra.mxu0 0.0
        %387 = vmatprep.subr.mxu0 0.0
        %388 = vmatpush1.msra.mxu0 0.0
        %389 = vmatprep.subr.mxu0 0.0
        %390 = vmatpush1.msra.mxu0 0.0
        %391 = vmatprep.subr.mxu0 0.0
        %392 = vmatpush1.msra.mxu0 0.0
        %393 = vmatprep.mubr.f32.mxu0 0.0
        %394 = vmatmul.mubr.f32.gmra.mrb[0].mxu0 %v294
        %v395 = vpop.f32.mrb[0].mxu0
        %v396 = vadd.f32 %v235, %v395
        %v397 = vpop.f32.mrb[0].mxu0
        %v398 = vadd.f32 %v235, %v397
        %399 = vmatprep.mubr.f32.mxu0 0.0
        %400 = vmatmul.mubr.f32.gmra.mrb[0].mxu0 %v297
        %v401 = vpop.f32.mrb[0].mxu0
        %v402 = vadd.f32 %v240, %v401
        %v403 = vpop.f32.mrb[0].mxu0
        %v404 = vadd.f32 %v240, %v403
        %405 = vmatprep.mubr.f32.mxu0 0.0
        %406 = vmatmul.mubr.f32.gmra.mrb[0].mxu0 %v300
        %v407 = vpop.f32.mrb[0].mxu0
        %v408 = vadd.f32 %v245, %v407
        %v409 = vpop.f32.mrb[0].mxu0
        %v410 = vadd.f32 %v245, %v409
        %411 = vmatprep.mubr.f32.mxu0 0.0
        %412 = vmatmul.mubr.f32.gmra.mrb[0].mxu0 %v303
        %v413 = vpop.f32.mrb[0].mxu0
        %v414 = vadd.f32 %v250, %v413
        %v415 = vpop.f32.mrb[0].mxu0
        %v416 = vadd.f32 %v250, %v415
        %417 = vmatprep.mubr.f32.mxu0 0.0
        %418 = vmatmul.mubr.f32.gmra.mrb[0].mxu0 %v306
        %v419 = vpop.f32.mrb[0].mxu0
        %v420 = vadd.f32 %v255, %v419
        %v421 = vpop.f32.mrb[0].mxu0
        %v422 = vadd.f32 %v255, %v421
        %423 = vmatprep.mubr.f32.mxu0 0.0
        %424 = vmatmul.mubr.f32.gmra.mrb[0].mxu0 %v309
        %v425 = vpop.f32.mrb[0].mxu0
        %v426 = vadd.f32 %v260, %v425
        %v427 = vpop.f32.mrb[0].mxu0
        %v428 = vadd.f32 %v260, %v427
        %429 = vmatprep.mubr.f32.mxu0 0.0
        %430 = vmatmul.mubr.f32.gmra.mrb[0].mxu0 %v312
        %v431 = vpop.f32.mrb[0].mxu0
        %v432 = vadd.f32 %v265, %v431
        %v433 = vpop.f32.mrb[0].mxu0
        %v434 = vadd.f32 %v265, %v433
        %435 = vmatprep.mubr.f32.mxu0 0.0
        %436 = vmatmul.mubr.f32.gmra.mrb[0].mxu0 %v315
        %v437 = vpop.f32.mrb[0].mxu0
        %v438 = vadd.f32 %v270, %v437
        %v439 = vpop.f32.mrb[0].mxu0
        %v440 = vadd.f32 %v270, %v439
        %441 = vmatprep.mubr.f32.mxu0 0.0
        %442 = vmatmul.mubr.f32.gmra.mrb[0].mxu0 %v318
        %v443 = vpop.f32.mrb[0].mxu0
        %v444 = vadd.f32 %v275, %v443
        %v445 = vpop.f32.mrb[0].mxu0
        %v446 = vadd.f32 %v275, %v445
        %447 = vmatprep.mubr.f32.mxu0 0.0
        %448 = vmatmul.mubr.f32.gmra.mrb[0].mxu0 %v321
        %v449 = vpop.f32.mrb[0].mxu0
        %v450 = vadd.f32 %v280, %v449
        %v451 = vpop.f32.mrb[0].mxu0
        %v452 = vadd.f32 %v280, %v451
        %453 = vmatprep.mubr.f32.mxu0 0.0
        %454 = vmatmul.mubr.f32.gmra.mrb[0].mxu0 %v324
        %v455 = vpop.f32.mrb[0].mxu0
        %v456 = vadd.f32 %v285, %v455
        %v457 = vpop.f32.mrb[0].mxu0
        %v458 = vadd.f32 %v285, %v457
        %459 = vmatprep.mubr.f32.mxu0 0.0
        %460 = vmatmul.mubr.f32.gmra.mrb[0].mxu0 %v327
        %v461 = vpop.f32.mrb[0].mxu0
        %v462 = vadd.f32 %v290, %v461
        %v463 = vpop.f32.mrb[0].mxu0
        %v464 = vadd.f32 %v290, %v463
        %465 = vdwg.mxu0
        %466 = vst [vmem:[%s188] sm:$0xff] %v396
        %467 = vst [vmem:[%s188 + $0x8] sm:$0xff] %v398
        %468 = vst [vmem:[%s188 + $0x10] sm:$0xff] %v402
        %469 = vst [vmem:[%s188 + $0x18] sm:$0xff] %v404
        %470 = vst [vmem:[%s188 + $0x20] sm:$0xff] %v408
        %471 = vst [vmem:[%s188 + $0x28] sm:$0xff] %v410
        %472 = vst [vmem:[%s188 + $0x30] sm:$0xff] %v414
        %473 = vst [vmem:[%s188 + $0x38] sm:$0xff] %v416
        %474 = vst [vmem:[%s188 + $0x40] sm:$0xff] %v420
        %475 = vst [vmem:[%s188 + $0x48] sm:$0xff] %v422
        %476 = vst [vmem:[%s188 + $0x50] sm:$0xff] %v426
        %477 = vst [vmem:[%s188 + $0x58] sm:$0xff] %v428
        %478 = vst [vmem:[%s188 + $0x60] sm:$0xff] %v432
        %479 = vst [vmem:[%s188 + $0x68] sm:$0xff] %v434
        %480 = vst [vmem:[%s188 + $0x70] sm:$0xff] %v438
        %481 = vst [vmem:[%s188 + $0x78] sm:$0xff] %v440
        %482 = vst [vmem:[%s188 + $0x80] sm:$0xff] %v444
        %483 = vst [vmem:[%s188 + $0x88] sm:$0xff] %v446
        %484 = vst [vmem:[%s188 + $0x90] sm:$0xff] %v450
        %485 = vst [vmem:[%s188 + $0x98] sm:$0xff] %v452
        %486 = vst [vmem:[%s188 + $0xa0] sm:$0xff] %v456
        %487 = vst [vmem:[%s188 + $0xa8] sm:$0xff] %v458
        %488 = vst [vmem:[%s188 + $0xb0] sm:$0xff] %v462
        %489 = vst [vmem:[%s188 + $0xb8] sm:$0xff] %v464
        %s490 = sand.u32 %s109, 1
        %s491 = scalar_lea.sflag [#allocation3], %s490
        %s492 = sand.u32 %s109, 1
        %s493 = smul.addr %s492, 192
        %s494 = scalar_lea.vmem [#allocation2], %s493
        // Predicated region
        $region33: #{tpu_custom_call.1} parent=31 // pred_check
          %p495 = pneg %p119
        $region34: #{tpu_custom_call.1} parent=31 // pred_check_branch
          %497 = sbr.rel (%p495) target = $region36
        $region35: #{tpu_custom_call.1} parent=31 // pred_region
          %s498 = smul.u32 2, %s22
          %s500 = ssub.s32 3072, 3072
          %501 = vsyncadd %s491, %s500
          %s502 = smul.addr %s21, 24
          %s503 = sadd.s32 %s498, %s502
          %s504 = smul.addr %s503, 128
          %s505 = scalar_lea.hbm %s3, %s504
          %s506 = sshll.u32 %s494, 4
          %s507 = int_to_ptr.vmem [resolvable:$true] %s506
          %512 = dma.vmem_to_hbm [thread:$0]  %s507, 3072, %s505, %s491, 256, 256, 16
        $region36: #{tpu_custom_call.1} parent=31 // pred_fallthru
          _
      $region32: #{tpu_custom_call.1} parent=5 // pred_fallthru
        _
      %p513 = scmp.le.s32.totalorder 2, %s12
      // Predicated region
      $region37: #{tpu_custom_call.1} parent=5 // pred_check
        %p514 = pneg %p513
      $region38: #{tpu_custom_call.1} parent=5 // pred_check_branch
        %516 = sbr.rel (%p514) target = $region40
      $region39: #{tpu_custom_call.1} parent=5 // pred_region
        %s517 = ssub.s32 %s12, 2
        // Predicated region
        $region41: #{tpu_custom_call.1} parent=39 // pred_check
          %p518 = pneg %p125
        $region42: #{tpu_custom_call.1} parent=39 // pred_check_branch
          %520 = sbr.rel (%p518) target = $region44
        $region43: #{tpu_custom_call.1} parent=39 // pred_region
          %s521 = sand.u32 %s110, 1
          %s522 = scalar_lea.sflag [#allocation3], %s521
          %s523 = sand.u32 %s110, 1
          %s524 = smul.addr %s523, 192
          %s525 = scalar_lea.vmem [#allocation2], %s524
          %526 = dma.done %s522, 3072
        $region44: #{tpu_custom_call.1} parent=39 // pred_fallthru
          _
      $region40: #{tpu_custom_call.1} parent=5 // pred_fallthru
        _
    $region6: #{tpu_custom_call.1} parent=1 // loop_footer
      %s16 = sadd.s32 1, %s12
    $region7: #{tpu_custom_call.1} parent=1 // loop_footer_branch
      %11 = sbr.rel target = $region3
    $region8: #{tpu_custom_call.1} parent=1 // loop_exit
      _
    %527 = vsyncpa [#allocation3], 1
    %s528 = scalar_lea.sflag [#allocation3], 1
    %529 = vsyncpa %s528, 1

</llo_original>
